<compile_context>
chip_gen: v7x
topology: tpu7x:2x2x1
jax: 0.10.0
libtpu: 0.0.40
codegen_flags: <defaults>
</compile_context>

<pallas_src>
import math
import functools

import jax
import jax.numpy as jnp
from jax.experimental import pallas as pl
from jax.experimental.pallas import tpu as pltpu


# ---------------------------------------------------------------------------
# Kernels
# ---------------------------------------------------------------------------

def _ln_linear_kernel(x_ref, g_ref, bsc_ref, w_ref, b_ref, o_ref, *, eps, activation):
    # y = LayerNorm(x) @ W + b   (optionally ReLU).  LN stats in f32, MXU f32 acc.
    x = x_ref[...].astype(jnp.float32)
    mean = jnp.mean(x, axis=-1, keepdims=True)
    var = jnp.mean((x - mean) ** 2, axis=-1, keepdims=True)
    h = (x - mean) * jax.lax.rsqrt(var + eps) * g_ref[...] + bsc_ref[...]
    y = jnp.dot(h, w_ref[...], preferred_element_type=jnp.float32) + b_ref[...]
    if activation == "relu":
        y = jnp.maximum(y, 0.0)
    o_ref[...] = y.astype(o_ref.dtype)


def _linear_kernel(x_ref, w_ref, b_ref, o_ref):
    # y = x @ W + b
    y = jnp.dot(x_ref[...], w_ref[...], preferred_element_type=jnp.float32)
    o_ref[...] = (y + b_ref[...]).astype(o_ref.dtype)


def _linear_residual_kernel(x_ref, w_ref, b_ref, res_ref, o_ref):
    # y = x @ W + b + residual   (residual add fused -> no extra HBM pass)
    y = jnp.dot(x_ref[...], w_ref[...], preferred_element_type=jnp.float32)
    y = y + b_ref[...] + res_ref[...].astype(jnp.float32)
    o_ref[...] = y.astype(o_ref.dtype)


def _layernorm_kernel(x_ref, g_ref, b_ref, o_ref, *, eps):
    # Final nn.LayerNorm: biased variance over last dim, eps inside rsqrt.
    x = x_ref[...].astype(jnp.float32)
    mean = jnp.mean(x, axis=-1, keepdims=True)
    var = jnp.mean((x - mean) ** 2, axis=-1, keepdims=True)
    y = (x - mean) * jax.lax.rsqrt(var + eps)
    o_ref[...] = (y * g_ref[...] + b_ref[...]).astype(o_ref.dtype)


def _mha_kernel(q_ref, k_ref, v_ref, kvalid_ref, o_ref, *, num_heads, scale, causal):
    # One batch per grid step, all heads processed inside (block-diagonal
    # per-head matmuls on the lane-dense [S, D] tiles -> no layout transposes).
    q = q_ref[0].astype(jnp.float32)          # [Sq, D]
    k = k_ref[0].astype(jnp.float32)          # [Sk, D]
    v = v_ref[0].astype(jnp.float32)          # [Sk, D]
    Sq, D = q.shape
    Sk = k.shape[0]
    dk = D // num_heads

    # Compact mask: per-key validity (+ in-kernel causal term), shared by heads.
    valid = jnp.broadcast_to(kvalid_ref[0] > 0.0, (Sq, Sk))
    if causal:
        row = jax.lax.broadcasted_iota(jnp.int32, (Sq, Sk), 0)
        col = jax.lax.broadcasted_iota(jnp.int32, (Sq, Sk), 1)
        valid = jnp.logical_and(valid, col <= row)
    bias = jnp.where(valid, 0.0, -1e9).astype(jnp.float32)   # [Sq, Sk]

    dn = (((1,), (1,)), ((), ()))   # contract last dims of both operands (no .T)
    outs = []
    for h in range(num_heads):      # static unrolled loop over heads
        sl = slice(h * dk, (h + 1) * dk)
        s = jax.lax.dot_general(q[:, sl], k[:, sl], dn,
                                preferred_element_type=jnp.float32) * scale + bias
        m = jnp.max(s, axis=-1, keepdims=True)
        p = jnp.exp(s - m)
        p = p * pl.reciprocal(jnp.sum(p, axis=-1, keepdims=True), approx=True)
        outs.append(jnp.dot(p, v[:, sl], preferred_element_type=jnp.float32))
    o_ref[0] = jnp.concatenate(outs, axis=-1).astype(o_ref.dtype)   # [Sq, D]


# ---------------------------------------------------------------------------
# Pallas wrappers
# ---------------------------------------------------------------------------

_PREFERRED_TM = 256


def _pick_tm(M, preferred=_PREFERRED_TM):
    if M <= preferred:
        return M
    tm = preferred
    while tm > 8 and M % tm != 0:
        tm //= 2
    return tm if M % tm == 0 else M


def _gemm_cost(M, K, N):
    return pl.CostEstimate(
        flops=2 * M * K * N,
        transcendentals=0,
        bytes_accessed=4 * (M * K + K * N + M * N + N),
    )


def ln_linear(x, gamma, beta, w, b, activation=None, eps=1e-5):
    M, K = x.shape
    _, N = w.shape
    tm = _pick_tm(M)
    return pl.pallas_call(
        functools.partial(_ln_linear_kernel, eps=eps, activation=activation),
        out_shape=jax.ShapeDtypeStruct((M, N), x.dtype),
        grid_spec=pltpu.PrefetchScalarGridSpec(
            num_scalar_prefetch=0,
            grid=(M // tm,),
            in_specs=[
                pl.BlockSpec((tm, K), lambda i: (i, 0)),
                pl.BlockSpec((1, K), lambda i: (0, 0)),
                pl.BlockSpec((1, K), lambda i: (0, 0)),
                pl.BlockSpec((K, N), lambda i: (0, 0)),
                pl.BlockSpec((1, N), lambda i: (0, 0)),
            ],
            out_specs=pl.BlockSpec((tm, N), lambda i: (i, 0)),
        ),
        compiler_params=pltpu.CompilerParams(dimension_semantics=("parallel",)),
        cost_estimate=_gemm_cost(M, K, N),
    )(x, gamma.reshape(1, K), beta.reshape(1, K), w, b.reshape(1, N))


def linear(x, w, b):
    M, K = x.shape
    _, N = w.shape
    tm = _pick_tm(M)
    return pl.pallas_call(
        _linear_kernel,
        out_shape=jax.ShapeDtypeStruct((M, N), x.dtype),
        grid_spec=pltpu.PrefetchScalarGridSpec(
            num_scalar_prefetch=0,
            grid=(M // tm,),
            in_specs=[
                pl.BlockSpec((tm, K), lambda i: (i, 0)),
                pl.BlockSpec((K, N), lambda i: (0, 0)),
                pl.BlockSpec((1, N), lambda i: (0, 0)),
            ],
            out_specs=pl.BlockSpec((tm, N), lambda i: (i, 0)),
        ),
        compiler_params=pltpu.CompilerParams(dimension_semantics=("parallel",)),
        cost_estimate=_gemm_cost(M, K, N),
    )(x, w, b.reshape(1, N))


def linear_residual(x, w, b, residual):
    M, K = x.shape
    _, N = w.shape
    tm = _pick_tm(M)
    return pl.pallas_call(
        _linear_residual_kernel,
        out_shape=jax.ShapeDtypeStruct((M, N), x.dtype),
        grid_spec=pltpu.PrefetchScalarGridSpec(
            num_scalar_prefetch=0,
            grid=(M // tm,),
            in_specs=[
                pl.BlockSpec((tm, K), lambda i: (i, 0)),
                pl.BlockSpec((K, N), lambda i: (0, 0)),
                pl.BlockSpec((1, N), lambda i: (0, 0)),
                pl.BlockSpec((tm, N), lambda i: (i, 0)),
            ],
            out_specs=pl.BlockSpec((tm, N), lambda i: (i, 0)),
        ),
        compiler_params=pltpu.CompilerParams(dimension_semantics=("parallel",)),
        cost_estimate=_gemm_cost(M, K, N),
    )(x, w, b.reshape(1, N), residual)


def layernorm(x, gamma, beta, eps=1e-5):
    M, D = x.shape
    tm = _pick_tm(M)
    return pl.pallas_call(
        functools.partial(_layernorm_kernel, eps=eps),
        out_shape=jax.ShapeDtypeStruct((M, D), x.dtype),
        grid_spec=pltpu.PrefetchScalarGridSpec(
            num_scalar_prefetch=0,
            grid=(M // tm,),
            in_specs=[
                pl.BlockSpec((tm, D), lambda i: (i, 0)),
                pl.BlockSpec((1, D), lambda i: (0, 0)),
                pl.BlockSpec((1, D), lambda i: (0, 0)),
            ],
            out_specs=pl.BlockSpec((tm, D), lambda i: (i, 0)),
        ),
        compiler_params=pltpu.CompilerParams(dimension_semantics=("parallel",)),
    )(x, gamma.reshape(1, D), beta.reshape(1, D))


def attention(q, k, v, key_valid, *, num_heads, causal):
    # q: [B, Sq, D], k/v: [B, Sk, D], key_valid: [B, 1, Sk] (1.0 keep / 0.0 mask)
    B, Sq, D = q.shape
    _, Sk, _ = k.shape
    scale = 1.0 / math.sqrt(D // num_heads)
    return pl.pallas_call(
        functools.partial(_mha_kernel, num_heads=num_heads, scale=scale, causal=causal),
        out_shape=jax.ShapeDtypeStruct((B, Sq, D), q.dtype),
        grid_spec=pltpu.PrefetchScalarGridSpec(
            num_scalar_prefetch=0,
            grid=(B,),
            in_specs=[
                pl.BlockSpec((1, Sq, D), lambda b: (b, 0, 0)),
                pl.BlockSpec((1, Sk, D), lambda b: (b, 0, 0)),
                pl.BlockSpec((1, Sk, D), lambda b: (b, 0, 0)),
                pl.BlockSpec((1, 1, Sk), lambda b: (b, 0, 0)),
            ],
            out_specs=pl.BlockSpec((1, Sq, D), lambda b: (b, 0, 0)),
        ),
        compiler_params=pltpu.CompilerParams(dimension_semantics=("parallel",)),
    )(q, k, v, key_valid)


# ---------------------------------------------------------------------------
# Parameter init + Decoder forward (glue in plain JAX: slices / reshapes only)
# ---------------------------------------------------------------------------

def init_params(key, num_layers, d_model, num_heads, d_ff):
    def dense(k, shape):
        return jax.random.normal(k, shape, jnp.float32) * 0.02

    layers = []
    for _ in range(num_layers):
        keys = jax.random.split(key, 8)
        key = keys[0]
        layers.append(dict(
            # masked self-attention (fused q|k|v projection)
            wqkv=dense(keys[1], (d_model, 3 * d_model)),
            bqkv=jnp.zeros((3 * d_model,), jnp.float32),
            wo1=dense(keys[2], (d_model, d_model)), bo1=jnp.zeros((d_model,), jnp.float32),
            ln1_g=jnp.ones((d_model,), jnp.float32), ln1_b=jnp.zeros((d_model,), jnp.float32),
            # cross-attention (fused k|v projection of memory)
            wq2=dense(keys[3], (d_model, d_model)), bq2=jnp.zeros((d_model,), jnp.float32),
            wkv2=dense(keys[4], (d_model, 2 * d_model)),
            bkv2=jnp.zeros((2 * d_model,), jnp.float32),
            wo2=dense(keys[5], (d_model, d_model)), bo2=jnp.zeros((d_model,), jnp.float32),
            ln2_g=jnp.ones((d_model,), jnp.float32), ln2_b=jnp.zeros((d_model,), jnp.float32),
            # position-wise FFN
            w1=dense(keys[6], (d_model, d_ff)), b1=jnp.zeros((d_ff,), jnp.float32),
            w2=dense(keys[7], (d_ff, d_model)), b2=jnp.zeros((d_model,), jnp.float32),
            ln3_g=jnp.ones((d_model,), jnp.float32), ln3_b=jnp.zeros((d_model,), jnp.float32),
        ))
    return dict(
        layers=layers,
        num_heads=num_heads,
        norm_g=jnp.ones((d_model,), jnp.float32),
        norm_b=jnp.zeros((d_model,), jnp.float32),
    )


def decoder_forward(params, x, memory, tgt_key_valid, src_key_valid):
    """Decoder.forward: for layer in layers: x = layer(x, memory, tgt_mask, src_mask); norm(x)."""
    B, S, D = x.shape
    _, Sm, _ = memory.shape
    H = params["num_heads"]

    x2 = x.reshape(B * S, D)
    mem2 = memory.reshape(B * Sm, D)

    for lp in params["layers"]:
        # ---- masked self-attention sublayer: x + W_o(SelfAttn(LN(x), tgt_mask)) ----
        qkv = ln_linear(x2, lp["ln1_g"], lp["ln1_b"], lp["wqkv"], lp["bqkv"])  # [B*S, 3D]
        q = qkv[:, :D].reshape(B, S, D)
        k = qkv[:, D:2 * D].reshape(B, S, D)
        v = qkv[:, 2 * D:].reshape(B, S, D)
        a = attention(q, k, v, tgt_key_valid, num_heads=H, causal=True)        # [B, S, D]
        x2 = linear_residual(a.reshape(B * S, D), lp["wo1"], lp["bo1"], x2)

        # ---- cross-attention sublayer: x + W_o(Attn(LN(x), memory, memory, src_mask)) ----
        qc = ln_linear(x2, lp["ln2_g"], lp["ln2_b"], lp["wq2"], lp["bq2"])     # [B*S, D]
        kv = linear(mem2, lp["wkv2"], lp["bkv2"])                              # [B*Sm, 2D]
        q = qc.reshape(B, S, D)
        k = kv[:, :D].reshape(B, Sm, D)
        v = kv[:, D:].reshape(B, Sm, D)
        a = attention(q, k, v, src_key_valid, num_heads=H, causal=False)       # [B, S, D]
        x2 = linear_residual(a.reshape(B * S, D), lp["wo2"], lp["bo2"], x2)

        # ---- feed-forward sublayer: x + W2(relu(W1(LN(x)))) ----
        f = ln_linear(x2, lp["ln3_g"], lp["ln3_b"], lp["w1"], lp["b1"], activation="relu")
        x2 = linear_residual(f, lp["w2"], lp["b2"], x2)

    # ---- final norm (self.norm) ----
    x2 = layernorm(x2, params["norm_g"], params["norm_b"])
    return x2.reshape(B, S, D)


# ---------------------------------------------------------------------------
# Main
# ---------------------------------------------------------------------------

if __name__ == "__main__":
    B, S_tgt, S_src, D, H, d_ff, num_layers = 2, 8, 8, 32, 4, 64, 2

    root = jax.random.PRNGKey(0)
    k_x, k_m, k_p = jax.random.split(root, 3)

    x = jax.random.normal(k_x, (B, S_tgt, D), jnp.float32)
    memory = jax.random.normal(k_m, (B, S_src, D), jnp.float32)

    # Compact masks (1.0 = attend-to key, 0.0 = masked out):
    #   tgt_mask = causal (built in-kernel) & target padding; src_mask = source padding.
    tgt_valid = jnp.ones((B, S_tgt), jnp.float32).at[1, -1:].set(0.0)
    src_valid = jnp.ones((B, S_src), jnp.float32).at[1, -2:].set(0.0)
    tgt_key_valid = tgt_valid[:, None, :]   # [B, 1, S_tgt]
    src_key_valid = src_valid[:, None, :]   # [B, 1, S_src]

    params = init_params(k_p, num_layers, D, H, d_ff)

    out = decoder_forward(params, x, memory, tgt_key_valid, src_key_valid)
    jax.block_until_ready(out)
    assert out.shape == (B, S_tgt, D) and out.dtype == jnp.float32
    print("KERNEL_OK")
</pallas_src>

<mosaic_0001>
module attributes {stable_mosaic.version = 11 : i64} {
  func.func @_ln_linear_kernel(%arg0: i32, %arg1: memref<16x32xf32, #tpu.memory_space<vmem>>, %arg2: memref<1x32xf32, #tpu.memory_space<vmem>>, %arg3: memref<1x32xf32, #tpu.memory_space<vmem>>, %arg4: memref<32x96xf32, #tpu.memory_space<vmem>>, %arg5: memref<1x96xf32, #tpu.memory_space<vmem>>, %arg6: memref<16x96xf32, #tpu.memory_space<vmem>>) attributes {dimension_semantics = [#tpu.dimension_semantics<parallel>], iteration_bounds = array<i64: 1>, scalar_prefetch = 0 : i64, scratch_operands = 0 : i64, tpu.core_type = #tpu.core_type<tc>, window_params = [{transform_indices = @transform_0, window_bounds = array<i64: 16, 32>}, {pipeline_mode = #tpu.pipeline_mode<synchronous>, transform_indices = @transform_1, window_bounds = array<i64: 1, 32>}, {pipeline_mode = #tpu.pipeline_mode<synchronous>, transform_indices = @transform_2, window_bounds = array<i64: 1, 32>}, {pipeline_mode = #tpu.pipeline_mode<synchronous>, transform_indices = @transform_3, window_bounds = array<i64: 32, 96>}, {pipeline_mode = #tpu.pipeline_mode<synchronous>, transform_indices = @transform_4, window_bounds = array<i64: 1, 96>}, {transform_indices = @transform_5, window_bounds = array<i64: 16, 96>}]} {
    %c0 = arith.constant 0 : index
    %c0_0 = arith.constant 0 : index
    %0 = vector.load %arg1[%c0, %c0_0] : memref<16x32xf32, #tpu.memory_space<vmem>>, vector<16x32xf32>
    %cst = arith.constant dense<0.000000e+00> : vector<16xf32>
    %1 = vector.multi_reduction <add>, %0, %cst [1] : vector<16x32xf32> to vector<16xf32>
    %2 = vector.shape_cast %1 : vector<16xf32> to vector<16x1xf32>
    %cst_1 = arith.constant 3.200000e+01 : f32
    %3 = vector.broadcast %cst_1 : f32 to vector<16x1xf32>
    %4 = arith.divf %2, %3 : vector<16x1xf32>
    %5 = vector.broadcast %4 : vector<16x1xf32> to vector<16x32xf32>
    %6 = arith.subf %0, %5 : vector<16x32xf32>
    %7 = arith.mulf %6, %6 : vector<16x32xf32>
    %cst_2 = arith.constant dense<0.000000e+00> : vector<16xf32>
    %8 = vector.multi_reduction <add>, %7, %cst_2 [1] : vector<16x32xf32> to vector<16xf32>
    %9 = vector.shape_cast %8 : vector<16xf32> to vector<16x1xf32>
    %cst_3 = arith.constant 3.200000e+01 : f32
    %10 = vector.broadcast %cst_3 : f32 to vector<16x1xf32>
    %11 = arith.divf %9, %10 : vector<16x1xf32>
    %12 = vector.broadcast %4 : vector<16x1xf32> to vector<16x32xf32>
    %13 = arith.subf %0, %12 : vector<16x32xf32>
    %cst_4 = arith.constant 9.99999974E-6 : f32
    %14 = vector.broadcast %cst_4 : f32 to vector<16x1xf32>
    %15 = arith.addf %11, %14 : vector<16x1xf32>
    %16 = math.rsqrt %15 : vector<16x1xf32>
    %17 = vector.broadcast %16 : vector<16x1xf32> to vector<16x32xf32>
    %18 = arith.mulf %13, %17 : vector<16x32xf32>
    %c0_5 = arith.constant 0 : index
    %c0_6 = arith.constant 0 : index
    %19 = vector.load %arg2[%c0_5, %c0_6] : memref<1x32xf32, #tpu.memory_space<vmem>>, vector<1x32xf32>
    %20 = vector.broadcast %19 : vector<1x32xf32> to vector<16x32xf32>
    %21 = arith.mulf %18, %20 : vector<16x32xf32>
    %c0_7 = arith.constant 0 : index
    %c0_8 = arith.constant 0 : index
    %22 = vector.load %arg3[%c0_7, %c0_8] : memref<1x32xf32, #tpu.memory_space<vmem>>, vector<1x32xf32>
    %23 = vector.broadcast %22 : vector<1x32xf32> to vector<16x32xf32>
    %24 = arith.addf %21, %23 : vector<16x32xf32>
    %c0_9 = arith.constant 0 : index
    %c0_10 = arith.constant 0 : index
    %25 = vector.load %arg4[%c0_9, %c0_10] : memref<32x96xf32, #tpu.memory_space<vmem>>, vector<32x96xf32>
    %cst_11 = arith.constant dense<0.000000e+00> : vector<16x96xf32>
    %26 = tpu.matmul %24, %25, %cst_11 {dimension_numbers = #tpu.dot_dimension_numbers<[1], [0], [0], [1], [0, 0, 1, 1], [], []>} : vector<16x32xf32>, vector<32x96xf32>, vector<16x96xf32> -> vector<16x96xf32>
    %c0_12 = arith.constant 0 : index
    %c0_13 = arith.constant 0 : index
    %27 = vector.load %arg5[%c0_12, %c0_13] : memref<1x96xf32, #tpu.memory_space<vmem>>, vector<1x96xf32>
    %28 = vector.broadcast %27 : vector<1x96xf32> to vector<16x96xf32>
    %29 = arith.addf %26, %28 : vector<16x96xf32>
    %c0_14 = arith.constant 0 : index
    %c0_15 = arith.constant 0 : index
    %30 = vector.load %arg6[%c0_14, %c0_15] : memref<16x96xf32, #tpu.memory_space<vmem>>, vector<16x96xf32>
    tpu.vector_store %arg6[%c0_14, %c0_15], %29 {strides = array<i32>} : memref<16x96xf32, #tpu.memory_space<vmem>>, vector<16x96xf32>,
    return
  }
  func.func @transform_0(%arg0: i32) -> (i32, i32) {
    %c0_i32 = arith.constant 0 : i32
    %c0_i32_0 = arith.constant 0 : i32
    return %arg0, %c0_i32 : i32, i32
  }
  func.func @transform_1(%arg0: i32) -> (i32, i32) {
    %c0_i32 = arith.constant 0 : i32
    %c0_i32_0 = arith.constant 0 : i32
    %c0_i32_1 = arith.constant 0 : i32
    return %c0_i32, %c0_i32_0 : i32, i32
  }
  func.func @transform_2(%arg0: i32) -> (i32, i32) {
    %c0_i32 = arith.constant 0 : i32
    %c0_i32_0 = arith.constant 0 : i32
    %c0_i32_1 = arith.constant 0 : i32
    return %c0_i32, %c0_i32_0 : i32, i32
  }
  func.func @transform_3(%arg0: i32) -> (i32, i32) {
    %c0_i32 = arith.constant 0 : i32
    %c0_i32_0 = arith.constant 0 : i32
    %c0_i32_1 = arith.constant 0 : i32
    return %c0_i32, %c0_i32_0 : i32, i32
  }
  func.func @transform_4(%arg0: i32) -> (i32, i32) {
    %c0_i32 = arith.constant 0 : i32
    %c0_i32_0 = arith.constant 0 : i32
    %c0_i32_1 = arith.constant 0 : i32
    return %c0_i32, %c0_i32_0 : i32, i32
  }
  func.func @transform_5(%arg0: i32) -> (i32, i32) {
    %c0_i32 = arith.constant 0 : i32
    %c0_i32_0 = arith.constant 0 : i32
    return %arg0, %c0_i32 : i32, i32
  }
}

</mosaic_0001>

<llo_original>
// kernel: tpu_custom_call.1
$region0: #{tpu_custom_call.1}
  #allocation0 [shape = 'u32[]', space=smem, size = 0x4, offset = 0x4, fixed_abs, tag = 'smem constant byte address 0x4 - core index']
  #allocation1 [shape = 'u32[144,128]{1,0:T(1,128)}', space=vmem, size = 0x12000, scoped, tag = 'internal scratch']
  %s0 = inlined_call_operand.hbm [shape: f32[16,32], index: 0, kind: input, shape index: {}]
  %s1 = inlined_call_operand.vmem [shape: f32[1,32], index: 1, kind: input, shape index: {}]
  %s2 = inlined_call_operand.vmem [shape: f32[1,32], index: 2, kind: input, shape index: {}]
  %s3 = inlined_call_operand.hbm [shape: f32[32,96], index: 3, kind: input, shape index: {}]
  %s4 = inlined_call_operand.vmem [shape: f32[1,96], index: 4, kind: input, shape index: {}]
  %s5 = inlined_call_operand.hbm [shape: f32[16,96], index: 5, kind: output, shape index: {}]
  %s6 = sld [smem:[#allocation0]]
  $region38: #{tpu_custom_call.1} parent=0
    _
  %s8 = ssub.s32 1, %s6
  %s9 = scalar_select 0, %s8, %s6
  $region1: #{tpu_custom_call.1} parent=0
    #allocation2 [shape = 'u8[8192]{0}', space=vmem, size = 0x2000, scoped, tag = 'input window, operand 0, single buffered']
    #allocation3 [shape = 's32[1]{0}', space=sflag, size = 0x4, scoped, tag = 'scoped memory for tpu_custom_call.1']
    #allocation4 [shape = 's32[1]{0}', space=sflag, size = 0x4, scoped, tag = 'scoped memory for tpu_custom_call.1']
    #allocation5 [shape = 'u8[16384]{0}', space=vmem, size = 0x4000, scoped, tag = 'input window, operand 3, single buffered']
    #allocation6 [shape = 's32[1]{0}', space=sflag, size = 0x4, scoped, tag = 'scoped memory for tpu_custom_call.1']
    #allocation7 [shape = 'u8[8192]{0}', space=vmem, size = 0x2000, scoped, tag = 'output window, operand 0, single buffered']
    %10 = vsyncpa [#allocation3], 0
    %11 = vsyncpa [#allocation6], 0
    %12 = vsyncpa [#allocation4], 0
    // Predicated region
    $region2: #{tpu_custom_call.1} parent=1 // pred_check
      _
    $region3: #{tpu_custom_call.1} parent=1 // pred_check_branch
      %14 = sbr.rel (0) target = $region5
    $region4: #{tpu_custom_call.1} parent=1 // pred_region
      %s16 = ssub.s32 256, 256
      %17 = vsyncadd [#allocation3], %s16
      %s18 = sshll.u32 [#allocation2], 4
      %s19 = int_to_ptr.vmem [resolvable:$true] %s18
      %24 = dma.hbm_to_vmem [thread:$0]  %s0, 256, %s19, [#allocation3], 128, 128, 8
    $region5: #{tpu_custom_call.1} parent=1 // pred_fallthru
      _
    // Predicated region
    $region6: #{tpu_custom_call.1} parent=1 // pred_check
      _
    $region7: #{tpu_custom_call.1} parent=1 // pred_check_branch
      %26 = sbr.rel (0) target = $region9
    $region8: #{tpu_custom_call.1} parent=1 // pred_region
      _
    $region9: #{tpu_custom_call.1} parent=1 // pred_fallthru
      _
    // Predicated region
    $region10: #{tpu_custom_call.1} parent=1 // pred_check
      _
    $region11: #{tpu_custom_call.1} parent=1 // pred_check_branch
      %28 = sbr.rel (0) target = $region13
    $region12: #{tpu_custom_call.1} parent=1 // pred_region
      _
    $region13: #{tpu_custom_call.1} parent=1 // pred_fallthru
      _
    // Predicated region
    $region14: #{tpu_custom_call.1} parent=1 // pred_check
      _
    $region15: #{tpu_custom_call.1} parent=1 // pred_check_branch
      %30 = sbr.rel (0) target = $region17
    $region16: #{tpu_custom_call.1} parent=1 // pred_region
      %s32 = ssub.s32 512, 512
      %33 = vsyncadd [#allocation6], %s32
      %s34 = sshll.u32 [#allocation5], 4
      %s35 = int_to_ptr.vmem [resolvable:$true] %s34
      %40 = dma.hbm_to_vmem [thread:$0]  %s3, 512, %s35, [#allocation6], 128, 128, 8
    $region17: #{tpu_custom_call.1} parent=1 // pred_fallthru
      _
    // Predicated region
    $region18: #{tpu_custom_call.1} parent=1 // pred_check
      _
    $region19: #{tpu_custom_call.1} parent=1 // pred_check_branch
      %42 = sbr.rel (0) target = $region21
    $region20: #{tpu_custom_call.1} parent=1 // pred_region
      _
    $region21: #{tpu_custom_call.1} parent=1 // pred_fallthru
      _
    // Predicated region
    $region22: #{tpu_custom_call.1} parent=1 // pred_check
      _
    $region23: #{tpu_custom_call.1} parent=1 // pred_check_branch
      %44 = sbr.rel (0) target = $region25
    $region24: #{tpu_custom_call.1} parent=1 // pred_region
      %45 = dma.done [#allocation3], 256
    $region25: #{tpu_custom_call.1} parent=1 // pred_fallthru
      _
    // Predicated region
    $region26: #{tpu_custom_call.1} parent=1 // pred_check
      _
    $region27: #{tpu_custom_call.1} parent=1 // pred_check_branch
      %47 = sbr.rel (0) target = $region29
    $region28: #{tpu_custom_call.1} parent=1 // pred_region
      %48 = dma.done [#allocation6], 512
    $region29: #{tpu_custom_call.1} parent=1 // pred_fallthru
      _
    %v49 = vld [vmem:[#allocation2] sm:$0xff]
    %v50 = vld [vmem:[#allocation2 + $0x8] sm:$0xff]
    %vm51 = vcmask 261120
    %v52 = vsel %vm51, %v49, 0.0
    %53 = vadd.xlane.f32.xlu0 %v52
    %v54 = vpop.xlane.xlu0 %53
    %v55 = vsel %vm51, %v50, 0.0
    %56 = vadd.xlane.f32.xlu0 %v55
    %v57 = vpop.xlane.xlu0 %56
    %v58 = vrcp.pop 32.0
    %v59 = vmul.f32 %v54, %v58
    %v60 = vmul.f32 %v57, %v58
    %v61 = vsub.f32 %v49, %v59
    %v62 = vsub.f32 %v50, %v60
    %v63 = vmul.f32 %v61, %v61
    %v64 = vmul.f32 %v62, %v62
    %v65 = vsel %vm51, %v63, 0.0
    %66 = vadd.xlane.f32.xlu0 %v65
    %v67 = vpop.xlane.xlu0 %66
    %v68 = vsel %vm51, %v64, 0.0
    %69 = vadd.xlane.f32.xlu0 %v68
    %v70 = vpop.xlane.xlu0 %69
    %v71 = vmul.f32 %v67, %v58
    %v72 = vmul.f32 %v70, %v58
    %v73 = vadd.f32 %v71, 1e-05
    %v74 = vadd.f32 %v72, 1e-05
    %v75 = vrsqrt.pop %v73
    %v76 = vrsqrt.pop %v74
    %v77 = vmul.f32 %v61, %v75
    %v78 = vmul.f32 %v62, %v76
    %v79 = vld [vmem:[%s1] sm:$0x1]
    %v81 = vlaneseq
    %v82 = vshrl.u32 %v81, 7
    %v83 = vsub.s32 0, %v82
    %v84 = vrot.slane %v79, %v83
    %v86 = vmul.f32 %v77, %v84
    %v87 = vmul.f32 %v78, %v84
    %v88 = vld [vmem:[%s2] sm:$0x1]
    %v90 = vlaneseq
    %v91 = vshrl.u32 %v90, 7
    %v92 = vsub.s32 0, %v91
    %v93 = vrot.slane %v88, %v92
    %v95 = vadd.f32 %v86, %v93
    %v96 = vadd.f32 %v87, %v93
    %v97 = vld [vmem:[#allocation5] sm:$0xff]
    %v98 = vld [vmem:[#allocation5 + $0x8] sm:$0xff]
    %v99 = vld [vmem:[#allocation5 + $0x10] sm:$0xff]
    %v100 = vld [vmem:[#allocation5 + $0x18] sm:$0xff]
    %v101 = vld [vmem:[%s4] sm:$0x1]
    %v103 = vlaneseq
    %v104 = vshrl.u32 %v103, 7
    %v105 = vsub.s32 0, %v104
    %v106 = vrot.slane %v101, %v105
    %v109 = vsel %vm51, %v95, 0
    %v112 = vsel %vm51, %v96, 0
    %114 = vmatprep.subr.mxu0 0.0
    %115 = vmatpush1.msra.mxu0 %v97
    %116 = vmatprep.subr.mxu0 0.0
    %117 = vmatpush1.msra.mxu0 %v98
    %118 = vmatprep.subr.mxu0 0.0
    %119 = vmatpush1.msra.mxu0 %v99
    %120 = vmatprep.subr.mxu0 0.0
    %121 = vmatpush1.msra.mxu0 %v100
    %122 = vmatprep.subr.mxu0 0.0
    %123 = vmatpush1.msra.mxu0 0.0
    %124 = vmatprep.subr.mxu0 0.0
    %125 = vmatpush1.msra.mxu0 0.0
    %126 = vmatprep.subr.mxu0 0.0
    %127 = vmatpush1.msra.mxu0 0.0
    %128 = vmatprep.subr.mxu0 0.0
    %129 = vmatpush1.msra.mxu0 0.0
    %130 = vmatprep.subr.mxu0 0.0
    %131 = vmatpush1.msra.mxu0 0.0
    %132 = vmatprep.subr.mxu0 0.0
    %133 = vmatpush1.msra.mxu0 0.0
    %134 = vmatprep.subr.mxu0 0.0
    %135 = vmatpush1.msra.mxu0 0.0
    %136 = vmatprep.subr.mxu0 0.0
    %137 = vmatpush1.msra.mxu0 0.0
    %138 = vmatprep.subr.mxu0 0.0
    %139 = vmatpush1.msra.mxu0 0.0
    %140 = vmatprep.subr.mxu0 0.0
    %141 = vmatpush1.msra.mxu0 0.0
    %142 = vmatprep.subr.mxu0 0.0
    %143 = vmatpush1.msra.mxu0 0.0
    %144 = vmatprep.subr.mxu0 0.0
    %145 = vmatpush1.msra.mxu0 0.0
    %146 = vmatprep.subr.mxu0 0.0
    %147 = vmatpush1.msra.mxu0 0.0
    %148 = vmatprep.subr.mxu0 0.0
    %149 = vmatpush1.msra.mxu0 0.0
    %150 = vmatprep.subr.mxu0 0.0
    %151 = vmatpush1.msra.mxu0 0.0
    %152 = vmatprep.subr.mxu0 0.0
    %153 = vmatpush1.msra.mxu0 0.0
    %154 = vmatprep.subr.mxu0 0.0
    %155 = vmatpush1.msra.mxu0 0.0
    %156 = vmatprep.subr.mxu0 0.0
    %157 = vmatpush1.msra.mxu0 0.0
    %158 = vmatprep.subr.mxu0 0.0
    %159 = vmatpush1.msra.mxu0 0.0
    %160 = vmatprep.subr.mxu0 0.0
    %161 = vmatpush1.msra.mxu0 0.0
    %162 = vmatprep.subr.mxu0 0.0
    %163 = vmatpush1.msra.mxu0 0.0
    %164 = vmatprep.subr.mxu0 0.0
    %165 = vmatpush1.msra.mxu0 0.0
    %166 = vmatprep.subr.mxu0 0.0
    %167 = vmatpush1.msra.mxu0 0.0
    %168 = vmatprep.subr.mxu0 0.0
    %169 = vmatpush1.msra.mxu0 0.0
    %170 = vmatprep.subr.mxu0 0.0
    %171 = vmatpush1.msra.mxu0 0.0
    %172 = vmatprep.subr.mxu0 0.0
    %173 = vmatpush1.msra.mxu0 0.0
    %174 = vmatprep.subr.mxu0 0.0
    %175 = vmatpush1.msra.mxu0 0.0
    %176 = vmatprep.subr.mxu0 0.0
    %177 = vmatpush1.msra.mxu0 0.0
    %178 = vmatprep.mubr.f32.mxu0 0.0
    %179 = vmatmul.mubr.f32.gmra.mrb[0].mxu0 %v109
    %v180 = vpop.f32.mrb[0].mxu0
    %v181 = vadd.f32 %v106, %v180
    %v182 = vpop.f32.mrb[0].mxu0
    %183 = vmatprep.mubr.f32.mxu0 0.0
    %184 = vmatmul.mubr.f32.gmra.mrb[0].mxu0 %v112
    %v185 = vpop.f32.mrb[0].mxu0
    %v186 = vadd.f32 %v106, %v185
    %v187 = vpop.f32.mrb[0].mxu0
    %188 = vdwg.mxu0
    %vm189 = vcmask 785408
    %190 = vst.msk [vmem:[#allocation7] sm:$0xff] %vm189, %v181
    %191 = vst.msk [vmem:[#allocation7 + $0x8] sm:$0xff] %vm189, %v186
    // Predicated region
    $region30: #{tpu_custom_call.1} parent=1 // pred_check
      _
    $region31: #{tpu_custom_call.1} parent=1 // pred_check_branch
      %193 = sbr.rel (0) target = $region33
    $region32: #{tpu_custom_call.1} parent=1 // pred_region
      %s195 = ssub.s32 256, 256
      %196 = vsyncadd [#allocation4], %s195
      %s197 = sshll.u32 [#allocation7], 4
      %s198 = int_to_ptr.vmem [resolvable:$true] %s197
      %203 = dma.vmem_to_hbm [thread:$0]  %s198, 256, %s5, [#allocation4], 128, 128, 8
    $region33: #{tpu_custom_call.1} parent=1 // pred_fallthru
      _
    // Predicated region
    $region34: #{tpu_custom_call.1} parent=1 // pred_check
      _
    $region35: #{tpu_custom_call.1} parent=1 // pred_check_branch
      %205 = sbr.rel (0) target = $region37
    $region36: #{tpu_custom_call.1} parent=1 // pred_region
      %206 = dma.done [#allocation4], 256
    $region37: #{tpu_custom_call.1} parent=1 // pred_fallthru
      _
    %207 = vsyncpa [#allocation3], 1
    %208 = vsyncpa [#allocation6], 1
    %209 = vsyncpa [#allocation4], 1

</llo_original>
